<compile_context>
chip_gen: v5e
topology: v5e:2x2
jax: 0.10.0
libtpu: 0.0.40
codegen_flags: <defaults>
</compile_context>

<pallas_src>
import functools

import jax
import jax.numpy as jnp
from jax import lax
from jax.experimental import pallas as pl
from jax.experimental.pallas import tpu as pltpu

NEG_BIG = -1.0e9


def _sim_tile(mask_ref, lhs_ref, rhs_ref, *, exp, matmul_dtype, eps):
    """Shared body: returns (masked similarity tile f32, lhs tile f32)."""
    lhs = lhs_ref[...].astype(jnp.float32)          # (Bt, N_1, dim)
    rhs = rhs_ref[...].astype(jnp.float32)          # (Bt, TN,  dim)

    # TODO(synk): normalize_vector source not given; assumed plain x / ||x||_2.
    lhs_ss = jnp.sum(lhs * lhs, axis=-1, keepdims=True)   # (Bt, N_1, 1)
    rhs_ss = jnp.sum(rhs * rhs, axis=-1, keepdims=True)   # (Bt, TN, 1)
    if eps:
        lhs_ss = jnp.maximum(lhs_ss, eps)
        rhs_ss = jnp.maximum(rhs_ss, eps)

    # rsqrt -> EUP slot, multiply -> VPU; MXU operands cast to bf16 by default.
    lhs_n = (lhs * lax.rsqrt(lhs_ss)).astype(matmul_dtype)
    rhs_n = (rhs * lax.rsqrt(rhs_ss)).astype(matmul_dtype)

    # Batched MXU contraction over the feature dim (no explicit transpose).
    sim = jnp.einsum("bnd,bmd->bnm", lhs_n, rhs_n,
                     preferred_element_type=jnp.float32)   # (Bt, N_1, TN) f32
    if exp != 1:
        sim = sim ** exp

    keep = mask_ref[...] != 0.0                      # (N_1, TN), resident input
    sim = jnp.where(keep[None, :, :], sim, NEG_BIG)
    return sim, lhs


def _kernel_sim(mask_ref, lhs_ref, rhs_ref, sim_ref, *, exp, matmul_dtype, eps):
    sim, _ = _sim_tile(mask_ref, lhs_ref, rhs_ref,
                       exp=exp, matmul_dtype=matmul_dtype, eps=eps)
    sim_ref[...] = sim.astype(sim_ref.dtype)


def _kernel_sim_norm(mask_ref, lhs_ref, rhs_ref, sim_ref, norm_ref, *,
                     exp, matmul_dtype, eps):
    sim, lhs = _sim_tile(mask_ref, lhs_ref, rhs_ref,
                         exp=exp, matmul_dtype=matmul_dtype, eps=eps)
    sim_ref[...] = sim.astype(sim_ref.dtype)
    # Lane-dense (Bt, N_1) store of the lhs L2 norm (avoids degenerate (N_1, 1)
    # one-lane masked stores).
    norm_ref[...] = jnp.sqrt(jnp.sum(lhs * lhs, axis=-1)).astype(norm_ref.dtype)


def local_cosine_similarity(lhs, rhs, *, exp=1, return_norm=False,
                            block_b=None, block_n=None,
                            matmul_dtype=jnp.bfloat16, eps=0.0):
    """Pallas implementation of LocalCosineSimilarity.forward.

    Returns (similarity, lhs_norm or None); similarity is (B, N_1, N_) float32,
    lhs_norm is (B, N_1, 1) float32 when return_norm=True.
    """
    B, N_1, dim = lhs.shape
    B_r, N_, dim_r = rhs.shape
    assert B == B_r and dim == dim_r
    N = N_1 + 1
    assert N_ % N == 0, "rhs token count must be a multiple of N_1 + 1"

    block_b = B if block_b is None else block_b
    block_n = N_ if block_n is None else block_n
    assert B % block_b == 0
    assert N_ % block_n == 0
    if block_n != N_:
        assert block_n % 128 == 0, "column tile must be a multiple of 128 lanes"

    # keep[r, c] <=> (c % N) == r + 1 : masks block position 0 and every
    # off-diagonal slot in one shot.  Computed once, resident across the grid.
    rows = jnp.arange(N_1, dtype=jnp.int32)[:, None]
    cols = jnp.arange(N_, dtype=jnp.int32)[None, :]
    keep_mask = ((cols % N) == (rows + 1)).astype(jnp.float32)   # (N_1, N_)

    grid = (B // block_b, N_ // block_n)

    mask_spec = pl.BlockSpec((N_1, block_n), lambda b, j: (0, j))
    lhs_spec = pl.BlockSpec((block_b, N_1, dim), lambda b, j: (b, 0, 0))
    rhs_spec = pl.BlockSpec((block_b, block_n, dim), lambda b, j: (b, j, 0))
    sim_spec = pl.BlockSpec((block_b, N_1, block_n), lambda b, j: (b, 0, j))

    if return_norm:
        kernel = functools.partial(_kernel_sim_norm, exp=exp,
                                   matmul_dtype=matmul_dtype, eps=eps)
        out_shape = (jax.ShapeDtypeStruct((B, N_1, N_), jnp.float32),
                     jax.ShapeDtypeStruct((B, N_1), jnp.float32))
        out_specs = (sim_spec, pl.BlockSpec((block_b, N_1), lambda b, j: (b, 0)))
        # The norm block is revisited across the column axis -> keep it arbitrary.
        dim_sem = ("parallel", "arbitrary")
    else:
        # No norm output at all: no dead compute, no dead HBM traffic.
        kernel = functools.partial(_kernel_sim, exp=exp,
                                   matmul_dtype=matmul_dtype, eps=eps)
        out_shape = jax.ShapeDtypeStruct((B, N_1, N_), jnp.float32)
        out_specs = sim_spec
        dim_sem = ("parallel", "parallel")

    # Raise the scoped VMEM limit only when the (double-buffered) tiles need it.
    bytes_in = (block_b * N_1 * dim * jnp.dtype(lhs.dtype).itemsize
                + block_b * block_n * dim * jnp.dtype(rhs.dtype).itemsize
                + N_1 * block_n * 4)
    bytes_out = block_b * N_1 * block_n * 4 + (block_b * N_1 * 4 if return_norm else 0)
    est = 2 * (bytes_in + bytes_out)
    vmem_limit = min(int(est * 1.25), 100 << 20) if est > (32 << 20) else None

    outs = pl.pallas_call(
        kernel,
        out_shape=out_shape,
        grid_spec=pltpu.PrefetchScalarGridSpec(
            num_scalar_prefetch=0,
            grid=grid,
            in_specs=[mask_spec, lhs_spec, rhs_spec],
            out_specs=out_specs,
        ),
        compiler_params=pltpu.CompilerParams(
            dimension_semantics=dim_sem,
            vmem_limit_bytes=vmem_limit),
    )(keep_mask, lhs, rhs)

    if return_norm:
        sim, norm2d = outs
        return sim, norm2d[:, :, None]          # (B, N_1, 1)
    return outs, None


def _reference(lhs, rhs, exp=1):
    """Pure-JAX reference mirroring the PyTorch forward."""
    B, N_1, dim = lhs.shape
    _, N_, _ = rhs.shape
    N = N_1 + 1
    F = N_ // N
    lhs_n = lhs / jnp.linalg.norm(lhs, axis=-1, keepdims=True)
    rhs_n = rhs / jnp.linalg.norm(rhs, axis=-1, keepdims=True)
    sim = jnp.einsum("bnd,bmd->bnm", lhs_n, rhs_n) ** exp
    sim4 = sim.reshape(B, N_1, F, N)
    eye = jnp.eye(N_1, dtype=bool)[None, :, None, :]        # (1, N_1, 1, N_1)
    tail = jnp.where(eye, sim4[..., -N_1:], NEG_BIG)
    sim4 = sim4.at[..., -N_1:].set(tail)
    sim4 = sim4.at[..., 0].set(NEG_BIG)
    return sim4.reshape(B, N_1, N_)


if __name__ == "__main__":
    key = jax.random.PRNGKey(0)
    k1, k2 = jax.random.split(key)

    B, N_1, dim = 2, 7, 32
    N = N_1 + 1          # 8
    F = 2
    N_ = F * N           # 16

    lhs = jax.random.normal(k1, (B, N_1, dim), dtype=jnp.float32)
    rhs = jax.random.normal(k2, (B, N_, dim), dtype=jnp.float32)

    ref = _reference(lhs, rhs, exp=1)

    # Default fast path: bf16 MXU operands, no norm output.
    sim, none_norm = local_cosine_similarity(lhs, rhs, exp=1, return_norm=False)
    sim = jax.block_until_ready(sim)
    assert sim.shape == (B, N_1, N_)
    assert none_norm is None
    # bf16 operands -> relaxed tolerance on the kept diagonal cosine values.
    assert jnp.allclose(sim, ref, atol=2e-2, rtol=2e-2), "bf16 path mismatch vs reference"

    # f32 MXU path with the lhs-norm output, at tight tolerance.
    sim32, lhs_norm = local_cosine_similarity(lhs, rhs, exp=1, return_norm=True,
                                              matmul_dtype=jnp.float32)
    sim32, lhs_norm = jax.block_until_ready((sim32, lhs_norm))
    assert jnp.allclose(sim32, ref, atol=1e-4, rtol=1e-4), "f32 path mismatch vs reference"
    ref_norm = jnp.linalg.norm(lhs, axis=-1, keepdims=True)
    assert lhs_norm.shape == (B, N_1, 1)
    assert jnp.allclose(lhs_norm, ref_norm, atol=1e-4, rtol=1e-4), "lhs_norm mismatch"

    print("KERNEL_OK")
</pallas_src>

<mosaic_0001>
module attributes {stable_mosaic.version = 11 : i64} {
  func.func @_kernel_sim(%arg0: i32, %arg1: i32, %arg2: memref<7x16xf32, #tpu.memory_space<vmem>>, %arg3: memref<2x7x32xf32, #tpu.memory_space<vmem>>, %arg4: memref<2x16x32xf32, #tpu.memory_space<vmem>>, %arg5: memref<2x7x16xf32, #tpu.memory_space<vmem>>) attributes {dimension_semantics = [#tpu.dimension_semantics<parallel>, #tpu.dimension_semantics<parallel>], iteration_bounds = array<i64: 1, 1>, scalar_prefetch = 0 : i64, scratch_operands = 0 : i64, tpu.core_type = #tpu.core_type<tc>, window_params = [{transform_indices = @transform_0, window_bounds = array<i64: 7, 16>}, {transform_indices = @transform_1, window_bounds = array<i64: 2, 7, 32>}, {transform_indices = @transform_2, window_bounds = array<i64: 2, 16, 32>}, {transform_indices = @transform_3, window_bounds = array<i64: 2, 7, 16>}]} {
    %c0 = arith.constant 0 : index
    %c0_0 = arith.constant 0 : index
    %c0_1 = arith.constant 0 : index
    %0 = vector.load %arg3[%c0, %c0_0, %c0_1] : memref<2x7x32xf32, #tpu.memory_space<vmem>>, vector<2x7x32xf32>
    %c0_2 = arith.constant 0 : index
    %c0_3 = arith.constant 0 : index
    %c0_4 = arith.constant 0 : index
    %1 = vector.load %arg4[%c0_2, %c0_3, %c0_4] : memref<2x16x32xf32, #tpu.memory_space<vmem>>, vector<2x16x32xf32>
    %2 = arith.mulf %0, %0 : vector<2x7x32xf32>
    %cst = arith.constant dense<0.000000e+00> : vector<2x7xf32>
    %3 = vector.multi_reduction <add>, %2, %cst [2] : vector<2x7x32xf32> to vector<2x7xf32>
    %4 = vector.shape_cast %3 : vector<2x7xf32> to vector<2x7x1xf32>
    %5 = arith.mulf %1, %1 : vector<2x16x32xf32>
    %cst_5 = arith.constant dense<0.000000e+00> : vector<2x16xf32>
    %6 = vector.multi_reduction <add>, %5, %cst_5 [2] : vector<2x16x32xf32> to vector<2x16xf32>
    %7 = vector.shape_cast %6 : vector<2x16xf32> to vector<2x16x1xf32>
    %8 = math.rsqrt %4 : vector<2x7x1xf32>
    %9 = vector.broadcast %8 : vector<2x7x1xf32> to vector<2x7x32xf32>
    %10 = arith.mulf %0, %9 : vector<2x7x32xf32>
    %11 = arith.truncf %10 : vector<2x7x32xf32> to vector<2x7x32xbf16>
    %12 = math.rsqrt %7 : vector<2x16x1xf32>
    %13 = vector.broadcast %12 : vector<2x16x1xf32> to vector<2x16x32xf32>
    %14 = arith.mulf %1, %13 : vector<2x16x32xf32>
    %15 = arith.truncf %14 : vector<2x16x32xf32> to vector<2x16x32xbf16>
    "tpu.trace_start"() <{level = 10 : i32, message = "bnd,bmd->bnm"}> : () -> ()
    %cst_6 = arith.constant dense<0.000000e+00> : vector<2x7x16xf32>
    %16 = tpu.matmul %11, %15, %cst_6 {dimension_numbers = #tpu.dot_dimension_numbers<[2], [2], [1], [1], [0, 0, 0, 1, 1, 1], [0], [0]>} : vector<2x7x32xbf16>, vector<2x16x32xbf16>, vector<2x7x16xf32> -> vector<2x7x16xf32>
    "tpu.trace_stop"() : () -> ()
    %c0_7 = arith.constant 0 : index
    %c0_8 = arith.constant 0 : index
    %17 = vector.load %arg2[%c0_7, %c0_8] : memref<7x16xf32, #tpu.memory_space<vmem>>, vector<7x16xf32>
    %cst_9 = arith.constant 0.000000e+00 : f32
    %18 = vector.broadcast %cst_9 : f32 to vector<7x16xf32>
    %19 = arith.cmpf one, %17, %18 : vector<7x16xf32>
    %20 = vector.shape_cast %19 : vector<7x16xi1> to vector<1x7x16xi1>
    %cst_10 = arith.constant -1.000000e+09 : f32
    %21 = vector.shape_cast %20 : vector<1x7x16xi1> to vector<1x7x16xi1>
    %22 = vector.broadcast %21 : vector<1x7x16xi1> to vector<2x7x16xi1>
    %23 = vector.broadcast %cst_10 : f32 to vector<2x7x16xf32>
    %24 = arith.select %22, %16, %23 : vector<2x7x16xi1>, vector<2x7x16xf32>
    %c0_11 = arith.constant 0 : index
    %c0_12 = arith.constant 0 : index
    %c0_13 = arith.constant 0 : index
    %25 = vector.load %arg5[%c0_11, %c0_12, %c0_13] : memref<2x7x16xf32, #tpu.memory_space<vmem>>, vector<2x7x16xf32>
    tpu.vector_store %arg5[%c0_11, %c0_12, %c0_13], %24 {strides = array<i32>} : memref<2x7x16xf32, #tpu.memory_space<vmem>>, vector<2x7x16xf32>,
    return
  }
  func.func @transform_0(%arg0: i32, %arg1: i32) -> (i32, i32) {
    %c0_i32 = arith.constant 0 : i32
    %c0_i32_0 = arith.constant 0 : i32
    return %c0_i32, %arg1 : i32, i32
  }
  func.func @transform_1(%arg0: i32, %arg1: i32) -> (i32, i32, i32) {
    %c0_i32 = arith.constant 0 : i32
    %c0_i32_0 = arith.constant 0 : i32
    %c0_i32_1 = arith.constant 0 : i32
    return %arg0, %c0_i32, %c0_i32_0 : i32, i32, i32
  }
  func.func @transform_2(%arg0: i32, %arg1: i32) -> (i32, i32, i32) {
    %c0_i32 = arith.constant 0 : i32
    %c0_i32_0 = arith.constant 0 : i32
    return %arg0, %arg1, %c0_i32 : i32, i32, i32
  }
  func.func @transform_3(%arg0: i32, %arg1: i32) -> (i32, i32, i32) {
    %c0_i32 = arith.constant 0 : i32
    %c0_i32_0 = arith.constant 0 : i32
    return %arg0, %c0_i32, %arg1 : i32, i32, i32
  }
}

</mosaic_0001>

<llo_original>
// kernel: tpu_custom_call.1
$region0: #{tpu_custom_call.1}
  #allocation0 [shape = 'u32[]', space=smem, size = 0x4, offset = 0x4, fixed_abs, tag = 'smem constant byte address 0x4 - core index']
  #allocation1 [shape = 'u32[72,128]{1,0:T(1,128)}', space=vmem, size = 0x9000, scoped, tag = 'internal scratch']
  %s0 = inlined_call_operand.vmem [shape: f32[7,16], index: 0, kind: input, shape index: {}]
  %s1 = inlined_call_operand.vmem [shape: f32[2,7,32], index: 1, kind: input, shape index: {}]
  %s2 = inlined_call_operand.hbm [shape: f32[2,16,32], index: 2, kind: input, shape index: {}]
  %s3 = inlined_call_operand.vmem [shape: f32[2,7,16], index: 3, kind: output, shape index: {}]
  %s4 = sld [smem:[#allocation0]]
  $region26: #{tpu_custom_call.1} parent=0
    _
  %s6 = ssub.s32 1, %s4
  %s7 = scalar_select 0, %s6, %s4
  $region1: #{tpu_custom_call.1} parent=0
    #allocation2 [shape = 'u8[16384]{0}', space=vmem, size = 0x4000, scoped, tag = 'input window, operand 2, single buffered']
    #allocation3 [shape = 's32[1]{0}', space=sflag, size = 0x4, scoped, tag = 'scoped memory for tpu_custom_call.1']
    %8 = vsyncpa [#allocation3], 0
    // Predicated region
    $region2: #{tpu_custom_call.1} parent=1 // pred_check
      _
    $region3: #{tpu_custom_call.1} parent=1 // pred_check_branch
      %10 = sbr.rel (0) target = $region5
    $region4: #{tpu_custom_call.1} parent=1 // pred_region
      _
    $region5: #{tpu_custom_call.1} parent=1 // pred_fallthru
      _
    // Predicated region
    $region6: #{tpu_custom_call.1} parent=1 // pred_check
      _
    $region7: #{tpu_custom_call.1} parent=1 // pred_check_branch
      %12 = sbr.rel (0) target = $region9
    $region8: #{tpu_custom_call.1} parent=1 // pred_region
      _
    $region9: #{tpu_custom_call.1} parent=1 // pred_fallthru
      _
    // Predicated region
    $region10: #{tpu_custom_call.1} parent=1 // pred_check
      _
    $region11: #{tpu_custom_call.1} parent=1 // pred_check_branch
      %14 = sbr.rel (0) target = $region13
    $region12: #{tpu_custom_call.1} parent=1 // pred_region
      %16 = vsyncadd [#allocation3], 0
      %s17 = sshll.u32 %s2, 4
      %s18 = int_to_ptr.hbm [resolvable:$true] %s17
      %s19 = sshll.u32 [#allocation2], 4
      %s20 = int_to_ptr.vmem [resolvable:$true] %s19
      %25 = dma.hbm_to_vmem [thread:$0]  %s18, 512, %s20, [#allocation3], 128, 128, 8
    $region13: #{tpu_custom_call.1} parent=1 // pred_fallthru
      _
    // Predicated region
    $region14: #{tpu_custom_call.1} parent=1 // pred_check
      _
    $region15: #{tpu_custom_call.1} parent=1 // pred_check_branch
      %27 = sbr.rel (0) target = $region17
    $region16: #{tpu_custom_call.1} parent=1 // pred_region
      %29 = dma.done [#allocation3], 512
    $region17: #{tpu_custom_call.1} parent=1 // pred_fallthru
      _
    %v31 = vld [vmem:[%s1] sm:$0x7f]
    %v32 = vld [vmem:[%s1 + $0x8] sm:$0x7f]
    %v33 = vld [vmem:[#allocation2] sm:$0xff]
    %v34 = vld [vmem:[#allocation2 + $0x8] sm:$0xff]
    %v35 = vld [vmem:[#allocation2 + $0x10] sm:$0xff]
    %v36 = vld [vmem:[#allocation2 + $0x18] sm:$0xff]
    %v37 = vmul.f32 %v31, %v31
    %v38 = vmul.f32 %v32, %v32
    %vm39 = vcmask 260096
    %v40 = vsel %vm39, %v37, 0.0
    %41 = vadd.xlane.f32.xlu0 %v40
    %v42 = vpop.xlane.xlu0 %41
    %v43 = vsel %vm39, %v38, 0.0
    %44 = vadd.xlane.f32.xlu0 %v43
    %v45 = vpop.xlane.xlu0 %44
    %v46 = vmul.f32 %v33, %v33
    %v47 = vmul.f32 %v34, %v34
    %v48 = vmul.f32 %v35, %v35
    %v49 = vmul.f32 %v36, %v36
    %vm50 = vcmask 261120
    %v51 = vsel %vm50, %v46, 0.0
    %52 = vadd.xlane.f32.xlu0 %v51
    %v53 = vpop.xlane.xlu0 %52
    %v54 = vsel %vm50, %v47, 0.0
    %55 = vadd.xlane.f32.xlu0 %v54
    %v56 = vpop.xlane.xlu0 %55
    %v57 = vsel %vm50, %v48, 0.0
    %58 = vadd.xlane.f32.xlu0 %v57
    %v59 = vpop.xlane.xlu0 %58
    %v60 = vsel %vm50, %v49, 0.0
    %61 = vadd.xlane.f32.xlu0 %v60
    %v62 = vpop.xlane.xlu0 %61
    %v63 = vrsqrt.pop %v42
    %v64 = vmul.f32 %v63, %v42
    %v65 = vmul.f32 %v64, %v63
    %v66 = vmul.f32 0.5, %v65
    %v67 = vsub.f32 1.5, %v66
    %v68 = vmul.f32 %v63, %v67
    %vm69 = vweird.f32 %v42
    %vm70 = vweird.f32 %v63
    %vm71 = vmor %vm69, %vm70
    %v72 = vsel %vm71, %v63, %v68
    %v73 = vrsqrt.pop %v45
    %v74 = vmul.f32 %v73, %v45
    %v75 = vmul.f32 %v74, %v73
    %v76 = vmul.f32 0.5, %v75
    %v77 = vsub.f32 1.5, %v76
    %v78 = vmul.f32 %v73, %v77
    %vm79 = vweird.f32 %v45
    %vm80 = vweird.f32 %v73
    %vm81 = vmor %vm79, %vm80
    %v82 = vsel %vm81, %v73, %v78
    %v83 = vmul.f32 %v31, %v72
    %v84 = vmul.f32 %v32, %v82
    %v85 = vpack.c.bf16 %v83, %v83
    %v86 = vpack.c.bf16 %v84, %v84
    %v87 = vrsqrt.pop %v53
    %v88 = vmul.f32 %v87, %v53
    %v89 = vmul.f32 %v88, %v87
    %v90 = vmul.f32 0.5, %v89
    %v91 = vsub.f32 1.5, %v90
    %v92 = vmul.f32 %v87, %v91
    %vm93 = vweird.f32 %v53
    %vm94 = vweird.f32 %v87
    %vm95 = vmor %vm93, %vm94
    %v96 = vsel %vm95, %v87, %v92
    %v97 = vrsqrt.pop %v56
    %v98 = vmul.f32 %v97, %v56
    %v99 = vmul.f32 %v98, %v97
    %v100 = vmul.f32 0.5, %v99
    %v101 = vsub.f32 1.5, %v100
    %v102 = vmul.f32 %v97, %v101
    %vm103 = vweird.f32 %v56
    %vm104 = vweird.f32 %v97
    %vm105 = vmor %vm103, %vm104
    %v106 = vsel %vm105, %v97, %v102
    %v107 = vrsqrt.pop %v59
    %v108 = vmul.f32 %v107, %v59
    %v109 = vmul.f32 %v108, %v107
    %v110 = vmul.f32 0.5, %v109
    %v111 = vsub.f32 1.5, %v110
    %v112 = vmul.f32 %v107, %v111
    %vm113 = vweird.f32 %v59
    %vm114 = vweird.f32 %v107
    %vm115 = vmor %vm113, %vm114
    %v116 = vsel %vm115, %v107, %v112
    %v117 = vrsqrt.pop %v62
    %v118 = vmul.f32 %v117, %v62
    %v119 = vmul.f32 %v118, %v117
    %v120 = vmul.f32 0.5, %v119
    %v121 = vsub.f32 1.5, %v120
    %v122 = vmul.f32 %v117, %v121
    %vm123 = vweird.f32 %v62
    %vm124 = vweird.f32 %v117
    %vm125 = vmor %vm123, %vm124
    %v126 = vsel %vm125, %v117, %v122
    %v127 = vmul.f32 %v33, %v96
    %v128 = vmul.f32 %v34, %v106
    %v129 = vmul.f32 %v35, %v116
    %v130 = vmul.f32 %v36, %v126
    %v131 = vpack.c.bf16 %v127, %v127
    %v132 = vpack.c.bf16 %v128, %v128
    %v133 = vpack.c.bf16 %v129, %v129
    %v134 = vpack.c.bf16 %v130, %v130
    %v137 = vunpack.c.l.b16 %v131
    %v138 = vunpack.c.l.b16 %v132
    %v139 = vpack.c.b16 %v138, %v137
    %v141 = vsel %vm50, %v85, 0
    %v144 = vsel %vm50, %v139, 0
    %146 = vmatpush.bf16.xpose.msra.mxu0 0
    %147 = vmatpush.bf16.xpose.msra.mxu0 0
    %148 = vmatpush.bf16.xpose.msra.mxu0 0
    %149 = vmatpush.bf16.xpose.msra.mxu0 0
    %150 = vmatpush.bf16.xpose.msra.mxu0 0
    %151 = vmatpush.bf16.xpose.msra.mxu0 0
    %152 = vmatpush.bf16.xpose.msra.mxu0 0
    %153 = vmatpush.bf16.xpose.msra.mxu0 %v144
    %154 = vmatmul.bf16.gmra.mxu0 %v141
    %v155 = vpop.f32.mrf.mxu0
    %v156 = vadd.f32 0.0, %v155
    %v157 = vpop.f32.mrf.mxu0
    %158 = vdwg.mxu0
    %v161 = vunpack.c.l.b16 %v133
    %v162 = vunpack.c.l.b16 %v134
    %v163 = vpack.c.b16 %v162, %v161
    %v165 = vsel %vm50, %v86, 0
    %v168 = vsel %vm50, %v163, 0
    %170 = vmatpush.bf16.xpose.msra.mxu0 0
    %171 = vmatpush.bf16.xpose.msra.mxu0 0
    %172 = vmatpush.bf16.xpose.msra.mxu0 0
    %173 = vmatpush.bf16.xpose.msra.mxu0 0
    %174 = vmatpush.bf16.xpose.msra.mxu0 0
    %175 = vmatpush.bf16.xpose.msra.mxu0 0
    %176 = vmatpush.bf16.xpose.msra.mxu0 0
    %177 = vmatpush.bf16.xpose.msra.mxu0 %v168
    %178 = vmatmul.bf16.gmra.mxu0 %v165
    %v179 = vpop.f32.mrf.mxu0
    %v180 = vadd.f32 0.0, %v179
    %v181 = vpop.f32.mrf.mxu0
    %182 = vdwg.mxu0
    %v183 = vld [vmem:[%s0] sm:$0x7f]
    %vm184 = vcmp.ne.f32.partialorder %v183, 0.0
    %v185 = vsel %vm184, 1, 0
    %vm186 = vcmp.eq.s32.totalorder %v185, 1
    %v187 = vsel %vm186, %v156, -1e+09
    %v188 = vsel %vm186, %v180, -1e+09
    %vm189 = vcmask 129024
    %190 = vst.msk [vmem:[%s3] sm:$0x7f] %vm189, %v187
    %191 = vst.msk [vmem:[%s3 + $0x8] sm:$0x7f] %vm189, %v188
    // Predicated region
    $region18: #{tpu_custom_call.1} parent=1 // pred_check
      _
    $region19: #{tpu_custom_call.1} parent=1 // pred_check_branch
      %193 = sbr.rel (0) target = $region21
    $region20: #{tpu_custom_call.1} parent=1 // pred_region
      _
    $region21: #{tpu_custom_call.1} parent=1 // pred_fallthru
      _
    // Predicated region
    $region22: #{tpu_custom_call.1} parent=1 // pred_check
      _
    $region23: #{tpu_custom_call.1} parent=1 // pred_check_branch
      %195 = sbr.rel (0) target = $region25
    $region24: #{tpu_custom_call.1} parent=1 // pred_region
      _
    $region25: #{tpu_custom_call.1} parent=1 // pred_fallthru
      _
    %196 = vsyncpa [#allocation3], 1

</llo_original>
